<compile_context>
chip_gen: v7x
topology: tpu7x:2x2x1
jax: 0.10.0
libtpu: 0.0.40
codegen_flags: <defaults>
</compile_context>

<pallas_src>
import functools

import jax
import jax.numpy as jnp
from jax.experimental import pallas as pl
from jax.experimental.pallas import tpu as pltpu

BN_EPS = 1e-5
_X_BYTES_PER_STEP = 2 * 1024 * 1024   # target ~2 MiB of x streamed per grid step


def _round_up(v, m):
    return (v + m - 1) // m * m


def _vmem_limit_bytes():
    """Generation-aware VMEM budget (v7x has 64 MiB/core, v5e/v6e 128 MiB)."""
    cap = None
    try:
        cap = getattr(pltpu.get_tpu_info(), "vmem_capacity_bytes", None)
    except Exception:
        cap = None
    if not cap:
        cap = 64 * 1024 * 1024          # conservative default (v7x per-core VMEM)
    return int(cap) * 3 // 4            # leave headroom for compiler scratch


def _pick_tile_hw(hw, cin, cout, x_itemsize, out_itemsize, vmem_limit):
    """Largest multiple-of-128 lane tile within the byte budget / VMEM cap."""
    hw_ceil = _round_up(max(hw, 1), 128)
    target = _X_BYTES_PER_STEP // max(1, cin * x_itemsize)
    # Double-buffered x and out blocks must use at most ~half the VMEM budget.
    cap = (vmem_limit // 2) // max(1, 2 * (cin * x_itemsize + cout * out_itemsize))
    tile = min(target, cap, hw_ceil)
    return max(128, (tile // 128) * 128)


def _stats_kernel(x_ref, w_ref, g_ref, b_ref, wscaled_ref, shift_ref,
                  sy_ref, sy2_ref, *, count, hw_total, tile_hw):
    # x_ref: (1, Cin, tile_hw); w_ref: (Cout, Cin); g/b: (Cout, 1).
    # Outputs: wscaled (Cout, Cin) = scale * W (BN scale folded into the weight),
    #          shift (Cout, 1) = beta - mean * scale.
    # Scratch: sum_y / sum_y2 (Cout, 1) f32 accumulators.
    n = pl.program_id(0)
    t = pl.program_id(1)

    @pl.when((n == 0) & (t == 0))
    def _():
        sy_ref[...] = jnp.zeros_like(sy_ref)
        sy2_ref[...] = jnp.zeros_like(sy2_ref)

    x = x_ref[0]                                                    # (Cin, tile)
    if hw_total % tile_hw != 0:
        # Ragged last tile: zero the out-of-bounds columns so they contribute
        # nothing to the sums (count below is the exact N*H*W).
        col = jax.lax.broadcasted_iota(jnp.int32, (1, tile_hw), 1)
        x = jnp.where(col + t * tile_hw < hw_total, x, 0)

    y = jnp.dot(w_ref[...], x, preferred_element_type=jnp.float32)  # (Cout, tile)
    sy_ref[...] += jnp.sum(y, axis=1, keepdims=True)
    sy2_ref[...] += jnp.sum(y * y, axis=1, keepdims=True)

    @pl.when((n == pl.num_programs(0) - 1) & (t == pl.num_programs(1) - 1))
    def _():
        inv_count = 1.0 / count
        mean = sy_ref[...] * inv_count
        var = jnp.maximum(sy2_ref[...] * inv_count - mean * mean, 0.0)
        inv_std = jax.lax.rsqrt(var + BN_EPS)
        scale = g_ref[...] * inv_std                                # (Cout, 1)
        wscaled_ref[...] = w_ref[...].astype(jnp.float32) * scale
        shift_ref[...] = b_ref[...] - mean * scale


def _normalize_kernel(x_ref, ws_ref, shift_ref, o_ref):
    # out = clip(W' @ x + shift, -1, 1); W' already carries the BN scale.
    y = jnp.dot(ws_ref[...], x_ref[0], preferred_element_type=jnp.float32)
    o_ref[0] = jnp.clip(y + shift_ref[...], -1.0, 1.0).astype(o_ref.dtype)


def _fused_kernel(x_ref, w_ref, g_ref, b_ref, o_ref, *, count):
    # Whole x resident in VMEM: conv, batch statistics and normalize+clip in
    # one kernel so x is read from HBM exactly once. y is staged in o_ref.
    n_imgs = x_ref.shape[0]
    cout = w_ref.shape[0]
    w = w_ref[...]
    sum_y = jnp.zeros((cout, 1), jnp.float32)
    sum_y2 = jnp.zeros((cout, 1), jnp.float32)
    for n in range(n_imgs):
        y = jnp.dot(w, x_ref[n], preferred_element_type=jnp.float32)
        o_ref[n] = y.astype(o_ref.dtype)
        sum_y = sum_y + jnp.sum(y, axis=1, keepdims=True)
        sum_y2 = sum_y2 + jnp.sum(y * y, axis=1, keepdims=True)
    inv_count = 1.0 / count
    mean = sum_y * inv_count
    var = jnp.maximum(sum_y2 * inv_count - mean * mean, 0.0)
    inv_std = jax.lax.rsqrt(var + BN_EPS)
    scale = g_ref[...] * inv_std
    shift = b_ref[...] - mean * scale
    for n in range(n_imgs):
        y = o_ref[n].astype(jnp.float32)
        o_ref[n] = jnp.clip(y * scale + shift, -1.0, 1.0).astype(o_ref.dtype)


def fp_conv_bn_hardtanh(x_nchw, weight, gamma, beta, *, fuse=None, tile_hw=None):
    """Forward of FpConvBnHardtanh: 1x1 conv (bias=False) -> BN (batch stats) -> Hardtanh.

    x_nchw: (N, Cin, H, W); weight: (Cout, Cin) or (Cout, Cin, 1, 1);
    gamma/beta: (Cout,). Streams in x's dtype (bf16 halves HBM traffic);
    accumulates in f32. Output has x's dtype.
    """
    N, Cin, H, W = x_nchw.shape
    if weight.ndim == 4:
        weight = weight.reshape(weight.shape[0], weight.shape[1])
    Cout = weight.shape[0]
    HW = H * W
    M = N * HW

    x_dtype = x_nchw.dtype
    out_dtype = x_dtype
    x = x_nchw.reshape(N, Cin, HW)                  # free reshape, no transpose
    w = weight.astype(x_dtype)
    g = gamma.reshape(Cout, 1).astype(jnp.float32)
    b = beta.reshape(Cout, 1).astype(jnp.float32)

    x_itemsize = jnp.dtype(x_dtype).itemsize
    out_itemsize = jnp.dtype(out_dtype).itemsize
    vmem_limit = _vmem_limit_bytes()

    # Fused single-read path when x + out comfortably fit in VMEM.
    fuse_budget = min(vmem_limit, 48 * 1024 * 1024) // 3
    fused_bytes = N * Cin * HW * x_itemsize + N * Cout * HW * out_itemsize
    if fuse is None:
        fuse = fused_bytes <= fuse_budget

    if fuse:
        out = pl.pallas_call(
            functools.partial(_fused_kernel, count=float(M)),
            out_shape=jax.ShapeDtypeStruct((N, Cout, HW), out_dtype),
            grid=(1,),
            in_specs=[
                pl.BlockSpec((N, Cin, HW), lambda i: (0, 0, 0)),
                pl.BlockSpec((Cout, Cin), lambda i: (0, 0)),
                pl.BlockSpec((Cout, 1), lambda i: (0, 0)),
                pl.BlockSpec((Cout, 1), lambda i: (0, 0)),
            ],
            out_specs=pl.BlockSpec((N, Cout, HW), lambda i: (0, 0, 0)),
            compiler_params=pltpu.CompilerParams(vmem_limit_bytes=vmem_limit),
        )(x, w, g, b)
        return out.reshape(N, Cout, H, W)

    if tile_hw is None:
        tile_hw = _pick_tile_hw(HW, Cin, Cout, x_itemsize, out_itemsize, vmem_limit)
    n_tiles = pl.cdiv(HW, tile_hw)

    # Pass 1: streamed sufficient statistics of y = W x  ->  fused (W', shift).
    w_scaled, shift = pl.pallas_call(
        functools.partial(_stats_kernel, count=float(M), hw_total=HW,
                          tile_hw=tile_hw),
        out_shape=(jax.ShapeDtypeStruct((Cout, Cin), jnp.float32),
                   jax.ShapeDtypeStruct((Cout, 1), jnp.float32)),
        grid=(N, n_tiles),
        in_specs=[
            pl.BlockSpec((1, Cin, tile_hw), lambda n, t: (n, 0, t)),
            pl.BlockSpec((Cout, Cin), lambda n, t: (0, 0)),
            pl.BlockSpec((Cout, 1), lambda n, t: (0, 0)),
            pl.BlockSpec((Cout, 1), lambda n, t: (0, 0)),
        ],
        out_specs=(pl.BlockSpec((Cout, Cin), lambda n, t: (0, 0)),
                   pl.BlockSpec((Cout, 1), lambda n, t: (0, 0))),
        scratch_shapes=[pltpu.VMEM((Cout, 1), jnp.float32),
                        pltpu.VMEM((Cout, 1), jnp.float32)],
        compiler_params=pltpu.CompilerParams(
            dimension_semantics=("arbitrary", "arbitrary"),
            vmem_limit_bytes=vmem_limit),
    )(x, w, g, b)

    # Pass 2: stream x tiles, out = clip(W' x + shift), lane-dense stores.
    out = pl.pallas_call(
        _normalize_kernel,
        out_shape=jax.ShapeDtypeStruct((N, Cout, HW), out_dtype),
        grid=(N, n_tiles),
        in_specs=[
            pl.BlockSpec((1, Cin, tile_hw), lambda n, t: (n, 0, t)),
            pl.BlockSpec((Cout, Cin), lambda n, t: (0, 0)),
            pl.BlockSpec((Cout, 1), lambda n, t: (0, 0)),
        ],
        out_specs=pl.BlockSpec((1, Cout, tile_hw), lambda n, t: (n, 0, t)),
        compiler_params=pltpu.CompilerParams(
            dimension_semantics=("parallel", "parallel"),
            vmem_limit_bytes=vmem_limit),
    )(x, w_scaled, shift)

    return out.reshape(N, Cout, H, W)


def _reference(x_nchw, weight, gamma, beta):
    # Pure-JAX (f32) reference of the same forward pass.
    Cout = weight.shape[0]
    x = x_nchw.astype(jnp.float32)
    w = weight.reshape(Cout, -1).astype(jnp.float32)
    y = jnp.einsum("oc,nchw->nohw", w, x)
    mean = jnp.mean(y, axis=(0, 2, 3), keepdims=True)
    var = jnp.mean((y - mean) ** 2, axis=(0, 2, 3), keepdims=True)
    y = (y - mean) / jnp.sqrt(var + BN_EPS)
    y = (y * gamma.reshape(1, Cout, 1, 1).astype(jnp.float32)
         + beta.reshape(1, Cout, 1, 1).astype(jnp.float32))
    return jnp.clip(y, -1.0, 1.0)


if __name__ == "__main__":
    key = jax.random.PRNGKey(0)
    kx, kw, kg, kb, kx2, kw2 = jax.random.split(key, 6)

    # --- Main case (module defaults, small shapes): fused single-read path. ---
    N, Cin, Cout, H, W = 2, 4, 8, 16, 16
    x = jax.random.normal(kx, (N, Cin, H, W), dtype=jnp.float32)
    weight = jax.random.normal(kw, (Cout, Cin), dtype=jnp.float32) * 0.5
    gamma = 1.0 + 0.1 * jax.random.normal(kg, (Cout,), dtype=jnp.float32)
    beta = 0.1 * jax.random.normal(kb, (Cout,), dtype=jnp.float32)

    out = jax.block_until_ready(fp_conv_bn_hardtanh(x, weight, gamma, beta))
    ref = _reference(x, weight, gamma, beta)
    assert out.shape == (N, Cout, H, W), out.shape
    assert jnp.allclose(out, ref, atol=2e-5, rtol=1e-5), "fused path mismatch"

    # --- Same case through the tiled two-pass path. ---
    out_t = jax.block_until_ready(
        fp_conv_bn_hardtanh(x, weight, gamma, beta, fuse=False))
    assert jnp.allclose(out_t, ref, atol=2e-5, rtol=1e-5), "tiled path mismatch"

    # --- Ragged-HW tiled case (HW=90, masked last tile) with Cin > Cout. ---
    N2, Cin2, Cout2, H2, W2 = 2, 16, 8, 9, 10
    x2 = jax.random.normal(kx2, (N2, Cin2, H2, W2), dtype=jnp.float32)
    weight2 = jax.random.normal(kw2, (Cout2, Cin2), dtype=jnp.float32) * 0.3
    gamma2 = jnp.ones((Cout2,), jnp.float32)
    beta2 = jnp.zeros((Cout2,), jnp.float32)
    out2 = jax.block_until_ready(
        fp_conv_bn_hardtanh(x2, weight2, gamma2, beta2, fuse=False))
    ref2 = _reference(x2, weight2, gamma2, beta2)
    assert jnp.allclose(out2, ref2, atol=2e-5, rtol=1e-5), "ragged tiled mismatch"

    # --- bf16 streaming smoke test (halved HBM traffic, f32 accumulation). ---
    out_bf = jax.block_until_ready(
        fp_conv_bn_hardtanh(x.astype(jnp.bfloat16), weight.astype(jnp.bfloat16),
                            gamma, beta, fuse=False))
    ref_bf = _reference(x.astype(jnp.bfloat16), weight.astype(jnp.bfloat16),
                        gamma, beta)
    assert jnp.allclose(out_bf.astype(jnp.float32), ref_bf,
                        atol=3e-2, rtol=3e-2), "bf16 path mismatch"

    print("KERNEL_OK")
</pallas_src>

<mosaic_0001>
module attributes {stable_mosaic.version = 11 : i64} {
  func.func @_fused_kernel(%arg0: i32, %arg1: memref<2x4x256xf32, #tpu.memory_space<vmem>>, %arg2: memref<8x4xf32, #tpu.memory_space<vmem>>, %arg3: memref<8x1xf32, #tpu.memory_space<vmem>>, %arg4: memref<8x1xf32, #tpu.memory_space<vmem>>, %arg5: memref<2x8x256xf32, #tpu.memory_space<vmem>>) attributes {dimension_semantics = [#tpu.dimension_semantics<arbitrary>], iteration_bounds = array<i64: 1>, scalar_prefetch = 0 : i64, scratch_operands = 0 : i64, tpu.core_type = #tpu.core_type<tc>, window_params = [{pipeline_mode = #tpu.pipeline_mode<synchronous>, transform_indices = @transform_0, window_bounds = array<i64: 2, 4, 256>}, {pipeline_mode = #tpu.pipeline_mode<synchronous>, transform_indices = @transform_1, window_bounds = array<i64: 8, 4>}, {pipeline_mode = #tpu.pipeline_mode<synchronous>, transform_indices = @transform_2, window_bounds = array<i64: 8, 1>}, {pipeline_mode = #tpu.pipeline_mode<synchronous>, transform_indices = @transform_3, window_bounds = array<i64: 8, 1>}, {pipeline_mode = #tpu.pipeline_mode<synchronous>, transform_indices = @transform_4, window_bounds = array<i64: 2, 8, 256>}]} {
    %c0 = arith.constant 0 : index
    %c0_0 = arith.constant 0 : index
    %0 = vector.load %arg2[%c0, %c0_0] : memref<8x4xf32, #tpu.memory_space<vmem>>, vector<8x4xf32>
    %cst = arith.constant 0.000000e+00 : f32
    %1 = vector.broadcast %cst : f32 to vector<8x1xf32>
    %cst_1 = arith.constant 0.000000e+00 : f32
    %2 = vector.broadcast %cst_1 : f32 to vector<8x1xf32>
    %c0_2 = arith.constant 0 : index
    %c0_3 = arith.constant 0 : index
    %c0_4 = arith.constant 0 : index
    %3 = vector.load %arg1[%c0_2, %c0_3, %c0_4] : memref<2x4x256xf32, #tpu.memory_space<vmem>>, vector<1x4x256xf32>
    %4 = vector.shape_cast %3 : vector<1x4x256xf32> to vector<4x256xf32>
    %cst_5 = arith.constant dense<0.000000e+00> : vector<8x256xf32>
    %5 = tpu.matmul %0, %4, %cst_5 {dimension_numbers = #tpu.dot_dimension_numbers<[1], [0], [0], [1], [0, 0, 1, 1], [], []>} : vector<8x4xf32>, vector<4x256xf32>, vector<8x256xf32> -> vector<8x256xf32>
    %c0_6 = arith.constant 0 : index
    %c0_7 = arith.constant 0 : index
    %c0_8 = arith.constant 0 : index
    %6 = vector.load %arg5[%c0_6, %c0_7, %c0_8] : memref<2x8x256xf32, #tpu.memory_space<vmem>>, vector<1x8x256xf32>
    %7 = vector.shape_cast %6 : vector<1x8x256xf32> to vector<8x256xf32>
    %8 = vector.shape_cast %5 : vector<8x256xf32> to vector<1x8x256xf32>
    tpu.vector_store %arg5[%c0_6, %c0_7, %c0_8], %8 {strides = array<i32>} : memref<2x8x256xf32, #tpu.memory_space<vmem>>, vector<1x8x256xf32>,
    %cst_9 = arith.constant dense<0.000000e+00> : vector<8xf32>
    %9 = vector.multi_reduction <add>, %5, %cst_9 [1] : vector<8x256xf32> to vector<8xf32>
    %10 = vector.shape_cast %9 : vector<8xf32> to vector<8x1xf32>
    %11 = arith.addf %1, %10 : vector<8x1xf32>
    %12 = arith.mulf %5, %5 : vector<8x256xf32>
    %cst_10 = arith.constant dense<0.000000e+00> : vector<8xf32>
    %13 = vector.multi_reduction <add>, %12, %cst_10 [1] : vector<8x256xf32> to vector<8xf32>
    %14 = vector.shape_cast %13 : vector<8xf32> to vector<8x1xf32>
    %15 = arith.addf %2, %14 : vector<8x1xf32>
    %c1 = arith.constant 1 : index
    %c0_11 = arith.constant 0 : index
    %c0_12 = arith.constant 0 : index
    %16 = vector.load %arg1[%c1, %c0_11, %c0_12] : memref<2x4x256xf32, #tpu.memory_space<vmem>>, vector<1x4x256xf32>
    %17 = vector.shape_cast %16 : vector<1x4x256xf32> to vector<4x256xf32>
    %cst_13 = arith.constant dense<0.000000e+00> : vector<8x256xf32>
    %18 = tpu.matmul %0, %17, %cst_13 {dimension_numbers = #tpu.dot_dimension_numbers<[1], [0], [0], [1], [0, 0, 1, 1], [], []>} : vector<8x4xf32>, vector<4x256xf32>, vector<8x256xf32> -> vector<8x256xf32>
    %c1_14 = arith.constant 1 : index
    %c0_15 = arith.constant 0 : index
    %c0_16 = arith.constant 0 : index
    %19 = vector.load %arg5[%c1_14, %c0_15, %c0_16] : memref<2x8x256xf32, #tpu.memory_space<vmem>>, vector<1x8x256xf32>
    %20 = vector.shape_cast %19 : vector<1x8x256xf32> to vector<8x256xf32>
    %21 = vector.shape_cast %18 : vector<8x256xf32> to vector<1x8x256xf32>
    tpu.vector_store %arg5[%c1_14, %c0_15, %c0_16], %21 {strides = array<i32>} : memref<2x8x256xf32, #tpu.memory_space<vmem>>, vector<1x8x256xf32>,
    %cst_17 = arith.constant dense<0.000000e+00> : vector<8xf32>
    %22 = vector.multi_reduction <add>, %18, %cst_17 [1] : vector<8x256xf32> to vector<8xf32>
    %23 = vector.shape_cast %22 : vector<8xf32> to vector<8x1xf32>
    %24 = arith.addf %11, %23 : vector<8x1xf32>
    %25 = arith.mulf %18, %18 : vector<8x256xf32>
    %cst_18 = arith.constant dense<0.000000e+00> : vector<8xf32>
    %26 = vector.multi_reduction <add>, %25, %cst_18 [1] : vector<8x256xf32> to vector<8xf32>
    %27 = vector.shape_cast %26 : vector<8xf32> to vector<8x1xf32>
    %28 = arith.addf %15, %27 : vector<8x1xf32>
    %cst_19 = arith.constant 0.001953125 : f32
    %29 = vector.broadcast %cst_19 : f32 to vector<8x1xf32>
    %30 = arith.mulf %24, %29 : vector<8x1xf32>
    %cst_20 = arith.constant 0.001953125 : f32
    %31 = vector.broadcast %cst_20 : f32 to vector<8x1xf32>
    %32 = arith.mulf %28, %31 : vector<8x1xf32>
    %33 = arith.mulf %30, %30 : vector<8x1xf32>
    %34 = arith.subf %32, %33 : vector<8x1xf32>
    %cst_21 = arith.constant 0.000000e+00 : f32
    %35 = vector.broadcast %cst_21 : f32 to vector<8x1xf32>
    %36 = arith.maximumf %34, %35 : vector<8x1xf32>
    %cst_22 = arith.constant 9.99999974E-6 : f32
    %37 = vector.broadcast %cst_22 : f32 to vector<8x1xf32>
    %38 = arith.addf %36, %37 : vector<8x1xf32>
    %39 = math.rsqrt %38 : vector<8x1xf32>
    %c0_23 = arith.constant 0 : index
    %c0_24 = arith.constant 0 : index
    %40 = vector.load %arg3[%c0_23, %c0_24] : memref<8x1xf32, #tpu.memory_space<vmem>>, vector<8x1xf32>
    %41 = arith.mulf %40, %39 : vector<8x1xf32>
    %c0_25 = arith.constant 0 : index
    %c0_26 = arith.constant 0 : index
    %42 = vector.load %arg4[%c0_25, %c0_26] : memref<8x1xf32, #tpu.memory_space<vmem>>, vector<8x1xf32>
    %43 = arith.mulf %30, %41 : vector<8x1xf32>
    %44 = arith.subf %42, %43 : vector<8x1xf32>
    %c0_27 = arith.constant 0 : index
    %c0_28 = arith.constant 0 : index
    %c0_29 = arith.constant 0 : index
    %45 = vector.load %arg5[%c0_27, %c0_28, %c0_29] : memref<2x8x256xf32, #tpu.memory_space<vmem>>, vector<1x8x256xf32>
    %46 = vector.shape_cast %45 : vector<1x8x256xf32> to vector<8x256xf32>
    %47 = vector.broadcast %41 : vector<8x1xf32> to vector<8x256xf32>
    %48 = arith.mulf %46, %47 : vector<8x256xf32>
    %49 = vector.broadcast %44 : vector<8x1xf32> to vector<8x256xf32>
    %50 = arith.addf %48, %49 : vector<8x256xf32>
    %cst_30 = arith.constant -1.000000e+00 : f32
    %cst_31 = arith.constant 1.000000e+00 : f32
    %51 = vector.broadcast %cst_30 : f32 to vector<8x256xf32>
    %52 = arith.maximumf %51, %50 : vector<8x256xf32>
    %53 = vector.broadcast %cst_31 : f32 to vector<8x256xf32>
    %54 = arith.minimumf %53, %52 : vector<8x256xf32>
    %c0_32 = arith.constant 0 : index
    %c0_33 = arith.constant 0 : index
    %c0_34 = arith.constant 0 : index
    %55 = vector.load %arg5[%c0_32, %c0_33, %c0_34] : memref<2x8x256xf32, #tpu.memory_space<vmem>>, vector<1x8x256xf32>
    %56 = vector.shape_cast %55 : vector<1x8x256xf32> to vector<8x256xf32>
    %57 = vector.shape_cast %54 : vector<8x256xf32> to vector<1x8x256xf32>
    tpu.vector_store %arg5[%c0_32, %c0_33, %c0_34], %57 {strides = array<i32>} : memref<2x8x256xf32, #tpu.memory_space<vmem>>, vector<1x8x256xf32>,
    %c1_35 = arith.constant 1 : index
    %c0_36 = arith.constant 0 : index
    %c0_37 = arith.constant 0 : index
    %58 = vector.load %arg5[%c1_35, %c0_36, %c0_37] : memref<2x8x256xf32, #tpu.memory_space<vmem>>, vector<1x8x256xf32>
    %59 = vector.shape_cast %58 : vector<1x8x256xf32> to vector<8x256xf32>
    %60 = vector.broadcast %41 : vector<8x1xf32> to vector<8x256xf32>
    %61 = arith.mulf %59, %60 : vector<8x256xf32>
    %62 = vector.broadcast %44 : vector<8x1xf32> to vector<8x256xf32>
    %63 = arith.addf %61, %62 : vector<8x256xf32>
    %cst_38 = arith.constant -1.000000e+00 : f32
    %cst_39 = arith.constant 1.000000e+00 : f32
    %64 = vector.broadcast %cst_38 : f32 to vector<8x256xf32>
    %65 = arith.maximumf %64, %63 : vector<8x256xf32>
    %66 = vector.broadcast %cst_39 : f32 to vector<8x256xf32>
    %67 = arith.minimumf %66, %65 : vector<8x256xf32>
    %c1_40 = arith.constant 1 : index
    %c0_41 = arith.constant 0 : index
    %c0_42 = arith.constant 0 : index
    %68 = vector.load %arg5[%c1_40, %c0_41, %c0_42] : memref<2x8x256xf32, #tpu.memory_space<vmem>>, vector<1x8x256xf32>
    %69 = vector.shape_cast %68 : vector<1x8x256xf32> to vector<8x256xf32>
    %70 = vector.shape_cast %67 : vector<8x256xf32> to vector<1x8x256xf32>
    tpu.vector_store %arg5[%c1_40, %c0_41, %c0_42], %70 {strides = array<i32>} : memref<2x8x256xf32, #tpu.memory_space<vmem>>, vector<1x8x256xf32>,
    return
  }
  func.func @transform_0(%arg0: i32) -> (i32, i32, i32) {
    %c0_i32 = arith.constant 0 : i32
    %c0_i32_0 = arith.constant 0 : i32
    %c0_i32_1 = arith.constant 0 : i32
    %c0_i32_2 = arith.constant 0 : i32
    return %c0_i32, %c0_i32_0, %c0_i32_1 : i32, i32, i32
  }
  func.func @transform_1(%arg0: i32) -> (i32, i32) {
    %c0_i32 = arith.constant 0 : i32
    %c0_i32_0 = arith.constant 0 : i32
    %c0_i32_1 = arith.constant 0 : i32
    return %c0_i32, %c0_i32_0 : i32, i32
  }
  func.func @transform_2(%arg0: i32) -> (i32, i32) {
    %c0_i32 = arith.constant 0 : i32
    %c0_i32_0 = arith.constant 0 : i32
    %c0_i32_1 = arith.constant 0 : i32
    return %c0_i32, %c0_i32_0 : i32, i32
  }
  func.func @transform_3(%arg0: i32) -> (i32, i32) {
    %c0_i32 = arith.constant 0 : i32
    %c0_i32_0 = arith.constant 0 : i32
    %c0_i32_1 = arith.constant 0 : i32
    return %c0_i32, %c0_i32_0 : i32, i32
  }
  func.func @transform_4(%arg0: i32) -> (i32, i32, i32) {
    %c0_i32 = arith.constant 0 : i32
    %c0_i32_0 = arith.constant 0 : i32
    %c0_i32_1 = arith.constant 0 : i32
    %c0_i32_2 = arith.constant 0 : i32
    return %c0_i32, %c0_i32_0, %c0_i32_1 : i32, i32, i32
  }
}

</mosaic_0001>

<llo_original>
// kernel: tpu_custom_call.1
$region0: #{tpu_custom_call.1}
  #allocation0 [shape = 'u32[]', space=smem, size = 0x4, offset = 0x4, fixed_abs, tag = 'smem constant byte address 0x4 - core index']
  #allocation1 [shape = 'u32[144,128]{1,0:T(1,128)}', space=vmem, size = 0x12000, scoped, tag = 'internal scratch']
  %s0 = inlined_call_operand.vmem [shape: f32[2,4,256], index: 0, kind: input, shape index: {}]
  %s1 = inlined_call_operand.vmem [shape: f32[8,4], index: 1, kind: input, shape index: {}]
  %s2 = inlined_call_operand.vmem [shape: f32[8,1], index: 2, kind: input, shape index: {}]
  %s3 = inlined_call_operand.vmem [shape: f32[8,1], index: 3, kind: input, shape index: {}]
  %s4 = inlined_call_operand.hbm [shape: f32[2,8,256], index: 4, kind: output, shape index: {}]
  %s5 = sld [smem:[#allocation0]]
  $region26: #{tpu_custom_call.1} parent=0
    _
  %s7 = ssub.s32 1, %s5
  %s8 = scalar_select 0, %s7, %s5
  $region1: #{tpu_custom_call.1} parent=0
    #allocation2 [shape = 'u8[16384]{0}', space=vmem, size = 0x4000, scoped, tag = 'output window, operand 0, single buffered']
    #allocation3 [shape = 's32[1]{0}', space=sflag, size = 0x4, scoped, tag = 'scoped memory for tpu_custom_call.1']
    %9 = vsyncpa [#allocation3], 0
    // Predicated region
    $region2: #{tpu_custom_call.1} parent=1 // pred_check
      _
    $region3: #{tpu_custom_call.1} parent=1 // pred_check_branch
      %11 = sbr.rel (0) target = $region5
    $region4: #{tpu_custom_call.1} parent=1 // pred_region
      _
    $region5: #{tpu_custom_call.1} parent=1 // pred_fallthru
      _
    // Predicated region
    $region6: #{tpu_custom_call.1} parent=1 // pred_check
      _
    $region7: #{tpu_custom_call.1} parent=1 // pred_check_branch
      %13 = sbr.rel (0) target = $region9
    $region8: #{tpu_custom_call.1} parent=1 // pred_region
      _
    $region9: #{tpu_custom_call.1} parent=1 // pred_fallthru
      _
    // Predicated region
    $region10: #{tpu_custom_call.1} parent=1 // pred_check
      _
    $region11: #{tpu_custom_call.1} parent=1 // pred_check_branch
      %15 = sbr.rel (0) target = $region13
    $region12: #{tpu_custom_call.1} parent=1 // pred_region
      _
    $region13: #{tpu_custom_call.1} parent=1 // pred_fallthru
      _
    // Predicated region
    $region14: #{tpu_custom_call.1} parent=1 // pred_check
      _
    $region15: #{tpu_custom_call.1} parent=1 // pred_check_branch
      %17 = sbr.rel (0) target = $region17
    $region16: #{tpu_custom_call.1} parent=1 // pred_region
      _
    $region17: #{tpu_custom_call.1} parent=1 // pred_fallthru
      _
    %v18 = vld [vmem:[%s1] sm:$0xff]
    %v19 = vld [vmem:[%s0] sm:$0xff]
    %v21 = vcombine.high %v19, %v19
    %vm22 = vcmask 31744
    %v24 = vsel %vm22, %v18, 0
    %vm26 = vcmask 1043456
    %v27 = vsel %vm26, %v19, 0
    %v29 = vsel %vm26, %v21, 0
    %31 = vmatprep.subr.mxu0 %v29
    %32 = vmatpush1.msra.mxu0 %v27
    %33 = vmatprep.subr.mxu0 0.0
    %34 = vmatpush1.msra.mxu0 0.0
    %35 = vmatprep.subr.mxu0 0.0
    %36 = vmatpush1.msra.mxu0 0.0
    %37 = vmatprep.subr.mxu0 0.0
    %38 = vmatpush1.msra.mxu0 0.0
    %39 = vmatprep.subr.mxu0 0.0
    %40 = vmatpush1.msra.mxu0 0.0
    %41 = vmatprep.subr.mxu0 0.0
    %42 = vmatpush1.msra.mxu0 0.0
    %43 = vmatprep.subr.mxu0 0.0
    %44 = vmatpush1.msra.mxu0 0.0
    %45 = vmatprep.subr.mxu0 0.0
    %46 = vmatpush1.msra.mxu0 0.0
    %47 = vmatprep.subr.mxu0 0.0
    %48 = vmatpush1.msra.mxu0 0.0
    %49 = vmatprep.subr.mxu0 0.0
    %50 = vmatpush1.msra.mxu0 0.0
    %51 = vmatprep.subr.mxu0 0.0
    %52 = vmatpush1.msra.mxu0 0.0
    %53 = vmatprep.subr.mxu0 0.0
    %54 = vmatpush1.msra.mxu0 0.0
    %55 = vmatprep.subr.mxu0 0.0
    %56 = vmatpush1.msra.mxu0 0.0
    %57 = vmatprep.subr.mxu0 0.0
    %58 = vmatpush1.msra.mxu0 0.0
    %59 = vmatprep.subr.mxu0 0.0
    %60 = vmatpush1.msra.mxu0 0.0
    %61 = vmatprep.subr.mxu0 0.0
    %62 = vmatpush1.msra.mxu0 0.0
    %63 = vmatprep.subr.mxu0 0.0
    %64 = vmatpush1.msra.mxu0 0.0
    %65 = vmatprep.subr.mxu0 0.0
    %66 = vmatpush1.msra.mxu0 0.0
    %67 = vmatprep.subr.mxu0 0.0
    %68 = vmatpush1.msra.mxu0 0.0
    %69 = vmatprep.subr.mxu0 0.0
    %70 = vmatpush1.msra.mxu0 0.0
    %71 = vmatprep.subr.mxu0 0.0
    %72 = vmatpush1.msra.mxu0 0.0
    %73 = vmatprep.subr.mxu0 0.0
    %74 = vmatpush1.msra.mxu0 0.0
    %75 = vmatprep.subr.mxu0 0.0
    %76 = vmatpush1.msra.mxu0 0.0
    %77 = vmatprep.subr.mxu0 0.0
    %78 = vmatpush1.msra.mxu0 0.0
    %79 = vmatprep.subr.mxu0 0.0
    %80 = vmatpush1.msra.mxu0 0.0
    %81 = vmatprep.subr.mxu0 0.0
    %82 = vmatpush1.msra.mxu0 0.0
    %83 = vmatprep.subr.mxu0 0.0
    %84 = vmatpush1.msra.mxu0 0.0
    %85 = vmatprep.subr.mxu0 0.0
    %86 = vmatpush1.msra.mxu0 0.0
    %87 = vmatprep.subr.mxu0 0.0
    %88 = vmatpush1.msra.mxu0 0.0
    %89 = vmatprep.subr.mxu0 0.0
    %90 = vmatpush1.msra.mxu0 0.0
    %91 = vmatprep.subr.mxu0 0.0
    %92 = vmatpush1.msra.mxu0 0.0
    %93 = vmatprep.subr.mxu0 0.0
    %94 = vmatpush1.msra.mxu0 0.0
    %95 = vmatprep.mubr.f32.mxu0 0.0
    %96 = vmatmul.mubr.f32.gmra.mrb[0].mxu0 %v24
    %v97 = vpop.f32.mrb[0].mxu0
    %v98 = vadd.f32 0.0, %v97
    %v99 = vpop.f32.mrb[0].mxu0
    %v100 = vadd.f32 0.0, %v99
    %101 = vdwg.mxu0
    %102 = vst [vmem:[#allocation2] sm:$0xff] %v98
    %103 = vst [vmem:[#allocation2 + $0x8] sm:$0xff] %v100
    %v104 = vadd.f32 %v98, %v100
    %105 = vadd.xlane.f32.xlu0 %v104
    %v106 = vpop.xlane.xlu0 %105
    %v107 = vadd.f32 %v106, 0.0
    %v108 = vmul.f32 %v98, %v98
    %v109 = vmul.f32 %v100, %v100
    %v110 = vadd.f32 %v108, %v109
    %111 = vadd.xlane.f32.xlu0 %v110
    %v112 = vpop.xlane.xlu0 %111
    %v113 = vadd.f32 %v112, 0.0
    %s114 = scalar_lea.vmem %s0, 8
    %v115 = vld [vmem:[%s114] sm:$0xff]
    %v117 = vcombine.high %v115, %v115
    %v118 = vsel %vm26, %v115, 0
    %v120 = vsel %vm26, %v117, 0
    %122 = vmatprep.subr.mxu0 %v120
    %123 = vmatpush1.msra.mxu0 %v118
    %124 = vmatprep.subr.mxu0 0.0
    %125 = vmatpush1.msra.mxu0 0.0
    %126 = vmatprep.subr.mxu0 0.0
    %127 = vmatpush1.msra.mxu0 0.0
    %128 = vmatprep.subr.mxu0 0.0
    %129 = vmatpush1.msra.mxu0 0.0
    %130 = vmatprep.subr.mxu0 0.0
    %131 = vmatpush1.msra.mxu0 0.0
    %132 = vmatprep.subr.mxu0 0.0
    %133 = vmatpush1.msra.mxu0 0.0
    %134 = vmatprep.subr.mxu0 0.0
    %135 = vmatpush1.msra.mxu0 0.0
    %136 = vmatprep.subr.mxu0 0.0
    %137 = vmatpush1.msra.mxu0 0.0
    %138 = vmatprep.subr.mxu0 0.0
    %139 = vmatpush1.msra.mxu0 0.0
    %140 = vmatprep.subr.mxu0 0.0
    %141 = vmatpush1.msra.mxu0 0.0
    %142 = vmatprep.subr.mxu0 0.0
    %143 = vmatpush1.msra.mxu0 0.0
    %144 = vmatprep.subr.mxu0 0.0
    %145 = vmatpush1.msra.mxu0 0.0
    %146 = vmatprep.subr.mxu0 0.0
    %147 = vmatpush1.msra.mxu0 0.0
    %148 = vmatprep.subr.mxu0 0.0
    %149 = vmatpush1.msra.mxu0 0.0
    %150 = vmatprep.subr.mxu0 0.0
    %151 = vmatpush1.msra.mxu0 0.0
    %152 = vmatprep.subr.mxu0 0.0
    %153 = vmatpush1.msra.mxu0 0.0
    %154 = vmatprep.subr.mxu0 0.0
    %155 = vmatpush1.msra.mxu0 0.0
    %156 = vmatprep.subr.mxu0 0.0
    %157 = vmatpush1.msra.mxu0 0.0
    %158 = vmatprep.subr.mxu0 0.0
    %159 = vmatpush1.msra.mxu0 0.0
    %160 = vmatprep.subr.mxu0 0.0
    %161 = vmatpush1.msra.mxu0 0.0
    %162 = vmatprep.subr.mxu0 0.0
    %163 = vmatpush1.msra.mxu0 0.0
    %164 = vmatprep.subr.mxu0 0.0
    %165 = vmatpush1.msra.mxu0 0.0
    %166 = vmatprep.subr.mxu0 0.0
    %167 = vmatpush1.msra.mxu0 0.0
    %168 = vmatprep.subr.mxu0 0.0
    %169 = vmatpush1.msra.mxu0 0.0
    %170 = vmatprep.subr.mxu0 0.0
    %171 = vmatpush1.msra.mxu0 0.0
    %172 = vmatprep.subr.mxu0 0.0
    %173 = vmatpush1.msra.mxu0 0.0
    %174 = vmatprep.subr.mxu0 0.0
    %175 = vmatpush1.msra.mxu0 0.0
    %176 = vmatprep.subr.mxu0 0.0
    %177 = vmatpush1.msra.mxu0 0.0
    %178 = vmatprep.subr.mxu0 0.0
    %179 = vmatpush1.msra.mxu0 0.0
    %180 = vmatprep.subr.mxu0 0.0
    %181 = vmatpush1.msra.mxu0 0.0
    %182 = vmatprep.subr.mxu0 0.0
    %183 = vmatpush1.msra.mxu0 0.0
    %184 = vmatprep.subr.mxu0 0.0
    %185 = vmatpush1.msra.mxu0 0.0
    %186 = vmatprep.mubr.f32.mxu0 0.0
    %187 = vmatmul.mubr.f32.gmra.mrb[0].mxu0 %v24
    %v188 = vpop.f32.mrb[0].mxu0
    %v189 = vadd.f32 0.0, %v188
    %v190 = vpop.f32.mrb[0].mxu0
    %v191 = vadd.f32 0.0, %v190
    %192 = vdwg.mxu0
    %s193 = scalar_lea.vmem [#allocation2], 16
    %194 = vst [vmem:[%s193] sm:$0xff] %v189
    %195 = vst [vmem:[%s193 + $0x8] sm:$0xff] %v191
    %v196 = vadd.f32 %v189, %v191
    %197 = vadd.xlane.f32.xlu0 %v196
    %v198 = vpop.xlane.xlu0 %197
    %v199 = vadd.f32 %v107, %v198
    %v200 = vmul.f32 %v189, %v189
    %v201 = vmul.f32 %v191, %v191
    %v202 = vadd.f32 %v200, %v201
    %203 = vadd.xlane.f32.xlu0 %v202
    %v204 = vpop.xlane.xlu0 %203
    %v205 = vadd.f32 %v113, %v204
    %v206 = vmul.f32 %v199, 0.001953125
    %v207 = vmul.f32 %v205, 0.001953125
    %v208 = vmul.f32 %v206, %v206
    %v209 = vsub.f32 %v207, %v208
    %v210 = vmax.f32 %v209, 0.0
    %v211 = vadd.f32 %v210, 1e-05
    %v212 = vrsqrt.pop %v211
    %v213 = vld [vmem:[%s2] sm:$0xff]
    %v214 = vmul.f32 %v213, %v212
    %v215 = vld [vmem:[%s3] sm:$0xff]
    %v216 = vmul.f32 %v206, %v214
    %v217 = vsub.f32 %v215, %v216
    %v218 = vld [vmem:[#allocation2] sm:$0xff]
    %v219 = vld [vmem:[#allocation2 + $0x8] sm:$0xff]
    %221 = vset.pattern.permute.xlu0 0
    %222 = vperm.xlu0 %221, %v214
    %v223 = vpop.permute.xlu0 %222
    %v225 = vmul.f32 %v218, %v223
    %v226 = vmul.f32 %v219, %v223
    %228 = vset.pattern.permute.xlu0 0
    %229 = vperm.xlu0 %228, %v217
    %v230 = vpop.permute.xlu0 %229
    %v232 = vadd.f32 %v225, %v230
    %v233 = vadd.f32 %v226, %v230
    %v234 = vmax.f32 %v232, -1.0
    %v235 = vmax.f32 %v233, -1.0
    %v236 = vmin.f32 %v234, 1.0
    %v237 = vmin.f32 %v235, 1.0
    %238 = vst [vmem:[#allocation2] sm:$0xff] %v236
    %239 = vst [vmem:[#allocation2 + $0x8] sm:$0xff] %v237
    %v240 = vld [vmem:[%s193] sm:$0xff]
    %v241 = vld [vmem:[%s193 + $0x8] sm:$0xff]
    %v242 = vmul.f32 %v240, %v223
    %v243 = vmul.f32 %v241, %v223
    %v244 = vadd.f32 %v242, %v230
    %v245 = vadd.f32 %v243, %v230
    %v246 = vmax.f32 %v244, -1.0
    %v247 = vmax.f32 %v245, -1.0
    %v248 = vmin.f32 %v246, 1.0
    %v249 = vmin.f32 %v247, 1.0
    %250 = vst [vmem:[%s193] sm:$0xff] %v248
    %251 = vst [vmem:[%s193 + $0x8] sm:$0xff] %v249
    // Predicated region
    $region18: #{tpu_custom_call.1} parent=1 // pred_check
      _
    $region19: #{tpu_custom_call.1} parent=1 // pred_check_branch
      %253 = sbr.rel (0) target = $region21
    $region20: #{tpu_custom_call.1} parent=1 // pred_region
      %s255 = ssub.s32 512, 512
      %256 = vsyncadd [#allocation3], %s255
      %s257 = sshll.u32 [#allocation2], 4
      %s258 = int_to_ptr.vmem [resolvable:$true] %s257
      %263 = dma.vmem_to_hbm [thread:$0]  %s258, 512, %s4, [#allocation3], 256, 256, 16
    $region21: #{tpu_custom_call.1} parent=1 // pred_fallthru
      _
    // Predicated region
    $region22: #{tpu_custom_call.1} parent=1 // pred_check
      _
    $region23: #{tpu_custom_call.1} parent=1 // pred_check_branch
      %265 = sbr.rel (0) target = $region25
    $region24: #{tpu_custom_call.1} parent=1 // pred_region
      %266 = dma.done [#allocation3], 512
    $region25: #{tpu_custom_call.1} parent=1 // pred_fallthru
      _
    %267 = vsyncpa [#allocation3], 1

</llo_original>
